<compile_context>
chip_gen: v7x
topology: tpu7x:2x2x1
jax: 0.10.0
libtpu: 0.0.40
codegen_flags: <defaults>
</compile_context>

<pallas_src>
import functools

import jax
import jax.numpy as jnp
from jax.experimental import pallas as pl
from jax.experimental.pallas import tpu as pltpu


# In + out resident bytes above which we tile the spatial (lane) axis.
# Conservative w.r.t. v7x (64 MiB physical / 32 MiB default scoped VMEM).
_WHOLE_ARRAY_VMEM_BYTES = 4 * 1024 * 1024


def _residual_conv1x1_kernel(n, c, x_ref, w_ref, b_ref, o_ref):
    """out[bi*C + o, :] = b[o] + sum_i w_eff[o, i] * x[bi*C + i, :]

    (the +x residual is already folded into w_eff = W + I by the wrapper).

    x_ref, o_ref : (N*C, HW_tile) in VMEM   (lanes = spatial, sublanes = N*C)
    w_ref        : (C, C)  in SMEM          (scalar reads)
    b_ref        : (C,)    in SMEM          (scalar reads)
    """
    rows = []
    for bi in range(n):                      # unrolled at trace time (n*c == 8)
        base = bi * c
        # Each input-channel row is read once from the ref (lane-dense row load).
        xi = [x_ref[pl.ds(base + i, 1), :] for i in range(c)]   # each (1, HW)
        for o in range(c):
            acc = b_ref[o] + w_ref[o, 0] * xi[0]                # bias + first FMA
            for i in range(1, c):
                acc = acc + w_ref[o, i] * xi[i]                 # scalar-weight VPU FMA
            rows.append(acc)
    # Assemble once, store once: a single unmasked full-block (N*C, HW) store.
    o_ref[...] = jnp.concatenate(rows, axis=0).astype(o_ref.dtype)


def _pick_lane_tile(nc, hw, itemsize):
    """Whole array if it comfortably fits VMEM; otherwise a 128-multiple lane tile."""
    whole_bytes = 2 * nc * hw * itemsize            # input + output resident
    if whole_bytes <= _WHOLE_ARRAY_VMEM_BYTES or hw % 128 != 0:
        return hw
    # Budget for double-buffered input + output blocks.
    budget_lanes = _WHOLE_ARRAY_VMEM_BYTES // (4 * nc * itemsize)
    tile = max((budget_lanes // 128) * 128, 128)
    while tile > 128 and hw % tile != 0:
        tile -= 128
    return tile if hw % tile == 0 else hw


def residual_1x1conv(x_nchw, weight, bias):
    """Residual(Conv2d(C, C, kernel_size=1)) forward.

    x_nchw : (N, C, H, W)
    weight : (C, C) or torch-style (C, C, 1, 1) 1x1-conv weight
    bias   : (C,)
    returns (N, C, H, W)
    """
    N, C, H, W = x_nchw.shape
    if weight.ndim == 4:
        assert weight.shape == (C, C, 1, 1), f"bad conv weight shape {weight.shape}"
        weight = weight.reshape(C, C)
    assert weight.shape == (C, C), f"expected ({C},{C}) weight, got {weight.shape}"
    assert bias.shape == (C,), f"expected ({C},) bias, got {bias.shape}"

    HW = H * W
    # Fold the residual into the weight: out = (W + I) @ x + b.
    w_eff = weight + jnp.eye(C, dtype=weight.dtype)
    # Free reshape (NCHW is contiguous): batch*channel packed on sublanes.
    x2 = x_nchw.reshape(N * C, HW)

    kernel = functools.partial(_residual_conv1x1_kernel, N, C)
    lane_tile = _pick_lane_tile(N * C, HW, x2.dtype.itemsize)

    if lane_tile == HW:
        # Whole problem in one kernel invocation: no grid, no pipeline overhead.
        out2 = pl.pallas_call(
            kernel,
            out_shape=jax.ShapeDtypeStruct((N * C, HW), x2.dtype),
            in_specs=[
                pl.BlockSpec(memory_space=pltpu.MemorySpace.VMEM),   # activations
                pl.BlockSpec(memory_space=pltpu.MemorySpace.SMEM),   # weight scalars
                pl.BlockSpec(memory_space=pltpu.MemorySpace.SMEM),   # bias scalars
            ],
            out_specs=pl.BlockSpec(memory_space=pltpu.MemorySpace.VMEM),
        )(x2, w_eff, bias)
    else:
        # Large spatial sizes: 1-D parallel grid over lane tiles (multiple of 128),
        # bounded VMEM footprint, both TensorCores usable on v7x.
        grid = (HW // lane_tile,)
        out2 = pl.pallas_call(
            kernel,
            out_shape=jax.ShapeDtypeStruct((N * C, HW), x2.dtype),
            grid_spec=pltpu.PrefetchScalarGridSpec(
                num_scalar_prefetch=0,
                grid=grid,
                in_specs=[
                    pl.BlockSpec((N * C, lane_tile), lambda j: (0, j)),
                    pl.BlockSpec(memory_space=pltpu.MemorySpace.SMEM),
                    pl.BlockSpec(memory_space=pltpu.MemorySpace.SMEM),
                ],
                out_specs=pl.BlockSpec((N * C, lane_tile), lambda j: (0, j)),
            ),
            compiler_params=pltpu.CompilerParams(
                dimension_semantics=("parallel",),
                vmem_limit_bytes=32 * 1024 * 1024,
            ),
        )(x2, w_eff, bias)

    return out2.reshape(N, C, H, W)


if __name__ == "__main__":
    key = jax.random.PRNGKey(0)
    kx, kw, kb = jax.random.split(key, 3)

    N, C, H, W = 2, 4, 16, 16
    x = jax.random.normal(kx, (N, C, H, W), dtype=jnp.float32)
    # Deterministic synthetic parameters for the inner fn (1x1 conv)
    weight = jax.random.normal(kw, (C, C), dtype=jnp.float32) * 0.1
    bias = jax.random.normal(kb, (C,), dtype=jnp.float32) * 0.1

    out = residual_1x1conv(x, weight, bias)
    out = jax.block_until_ready(out)

    # Pure-JAX reference: fn(x) + x with fn = 1x1 conv (NCHW einsum)
    ref = jnp.einsum("nchw,oc->nohw", x, weight) + bias[None, :, None, None] + x
    assert out.shape == (N, C, H, W)
    assert jnp.allclose(out, ref, atol=1e-5, rtol=1e-5)

    print("KERNEL_OK")
</pallas_src>

<mosaic_0001>
module attributes {stable_mosaic.version = 11 : i64} {
  func.func @_residual_conv1x1_kernel(%arg0: memref<8x256xf32, #tpu.memory_space<vmem>>, %arg1: memref<4x4xf32, #tpu.memory_space<smem>>, %arg2: memref<4xf32, #tpu.memory_space<smem>>, %arg3: memref<8x256xf32, #tpu.memory_space<vmem>>) attributes {dimension_semantics = [], scalar_prefetch = 0 : i64, scratch_operands = 0 : i64, tpu.core_type = #tpu.core_type<tc>} {
    %c0 = arith.constant 0 : index
    %c0_0 = arith.constant 0 : index
    %0 = vector.load %arg0[%c0, %c0_0] : memref<8x256xf32, #tpu.memory_space<vmem>>, vector<1x256xf32>
    %c1 = arith.constant 1 : index
    %c0_1 = arith.constant 0 : index
    %1 = vector.load %arg0[%c1, %c0_1] : memref<8x256xf32, #tpu.memory_space<vmem>>, vector<1x256xf32>
    %c2 = arith.constant 2 : index
    %c0_2 = arith.constant 0 : index
    %2 = vector.load %arg0[%c2, %c0_2] : memref<8x256xf32, #tpu.memory_space<vmem>>, vector<1x256xf32>
    %c3 = arith.constant 3 : index
    %c0_3 = arith.constant 0 : index
    %3 = vector.load %arg0[%c3, %c0_3] : memref<8x256xf32, #tpu.memory_space<vmem>>, vector<1x256xf32>
    %c0_4 = arith.constant 0 : index
    %4 = memref.load %arg2[%c0_4] : memref<4xf32, #tpu.memory_space<smem>>
    %c0_5 = arith.constant 0 : index
    %c0_6 = arith.constant 0 : index
    %5 = memref.load %arg1[%c0_5, %c0_6] : memref<4x4xf32, #tpu.memory_space<smem>>
    %6 = vector.broadcast %5 : f32 to vector<1x256xf32>
    %7 = arith.mulf %6, %0 : vector<1x256xf32>
    %8 = vector.broadcast %4 : f32 to vector<1x256xf32>
    %9 = arith.addf %8, %7 : vector<1x256xf32>
    %c0_7 = arith.constant 0 : index
    %c1_8 = arith.constant 1 : index
    %10 = memref.load %arg1[%c0_7, %c1_8] : memref<4x4xf32, #tpu.memory_space<smem>>
    %11 = vector.broadcast %10 : f32 to vector<1x256xf32>
    %12 = arith.mulf %11, %1 : vector<1x256xf32>
    %13 = arith.addf %9, %12 : vector<1x256xf32>
    %c0_9 = arith.constant 0 : index
    %c2_10 = arith.constant 2 : index
    %14 = memref.load %arg1[%c0_9, %c2_10] : memref<4x4xf32, #tpu.memory_space<smem>>
    %15 = vector.broadcast %14 : f32 to vector<1x256xf32>
    %16 = arith.mulf %15, %2 : vector<1x256xf32>
    %17 = arith.addf %13, %16 : vector<1x256xf32>
    %c0_11 = arith.constant 0 : index
    %c3_12 = arith.constant 3 : index
    %18 = memref.load %arg1[%c0_11, %c3_12] : memref<4x4xf32, #tpu.memory_space<smem>>
    %19 = vector.broadcast %18 : f32 to vector<1x256xf32>
    %20 = arith.mulf %19, %3 : vector<1x256xf32>
    %21 = arith.addf %17, %20 : vector<1x256xf32>
    %c1_13 = arith.constant 1 : index
    %22 = memref.load %arg2[%c1_13] : memref<4xf32, #tpu.memory_space<smem>>
    %c1_14 = arith.constant 1 : index
    %c0_15 = arith.constant 0 : index
    %23 = memref.load %arg1[%c1_14, %c0_15] : memref<4x4xf32, #tpu.memory_space<smem>>
    %24 = vector.broadcast %23 : f32 to vector<1x256xf32>
    %25 = arith.mulf %24, %0 : vector<1x256xf32>
    %26 = vector.broadcast %22 : f32 to vector<1x256xf32>
    %27 = arith.addf %26, %25 : vector<1x256xf32>
    %c1_16 = arith.constant 1 : index
    %c1_17 = arith.constant 1 : index
    %28 = memref.load %arg1[%c1_16, %c1_17] : memref<4x4xf32, #tpu.memory_space<smem>>
    %29 = vector.broadcast %28 : f32 to vector<1x256xf32>
    %30 = arith.mulf %29, %1 : vector<1x256xf32>
    %31 = arith.addf %27, %30 : vector<1x256xf32>
    %c1_18 = arith.constant 1 : index
    %c2_19 = arith.constant 2 : index
    %32 = memref.load %arg1[%c1_18, %c2_19] : memref<4x4xf32, #tpu.memory_space<smem>>
    %33 = vector.broadcast %32 : f32 to vector<1x256xf32>
    %34 = arith.mulf %33, %2 : vector<1x256xf32>
    %35 = arith.addf %31, %34 : vector<1x256xf32>
    %c1_20 = arith.constant 1 : index
    %c3_21 = arith.constant 3 : index
    %36 = memref.load %arg1[%c1_20, %c3_21] : memref<4x4xf32, #tpu.memory_space<smem>>
    %37 = vector.broadcast %36 : f32 to vector<1x256xf32>
    %38 = arith.mulf %37, %3 : vector<1x256xf32>
    %39 = arith.addf %35, %38 : vector<1x256xf32>
    %c2_22 = arith.constant 2 : index
    %40 = memref.load %arg2[%c2_22] : memref<4xf32, #tpu.memory_space<smem>>
    %c2_23 = arith.constant 2 : index
    %c0_24 = arith.constant 0 : index
    %41 = memref.load %arg1[%c2_23, %c0_24] : memref<4x4xf32, #tpu.memory_space<smem>>
    %42 = vector.broadcast %41 : f32 to vector<1x256xf32>
    %43 = arith.mulf %42, %0 : vector<1x256xf32>
    %44 = vector.broadcast %40 : f32 to vector<1x256xf32>
    %45 = arith.addf %44, %43 : vector<1x256xf32>
    %c2_25 = arith.constant 2 : index
    %c1_26 = arith.constant 1 : index
    %46 = memref.load %arg1[%c2_25, %c1_26] : memref<4x4xf32, #tpu.memory_space<smem>>
    %47 = vector.broadcast %46 : f32 to vector<1x256xf32>
    %48 = arith.mulf %47, %1 : vector<1x256xf32>
    %49 = arith.addf %45, %48 : vector<1x256xf32>
    %c2_27 = arith.constant 2 : index
    %c2_28 = arith.constant 2 : index
    %50 = memref.load %arg1[%c2_27, %c2_28] : memref<4x4xf32, #tpu.memory_space<smem>>
    %51 = vector.broadcast %50 : f32 to vector<1x256xf32>
    %52 = arith.mulf %51, %2 : vector<1x256xf32>
    %53 = arith.addf %49, %52 : vector<1x256xf32>
    %c2_29 = arith.constant 2 : index
    %c3_30 = arith.constant 3 : index
    %54 = memref.load %arg1[%c2_29, %c3_30] : memref<4x4xf32, #tpu.memory_space<smem>>
    %55 = vector.broadcast %54 : f32 to vector<1x256xf32>
    %56 = arith.mulf %55, %3 : vector<1x256xf32>
    %57 = arith.addf %53, %56 : vector<1x256xf32>
    %c3_31 = arith.constant 3 : index
    %58 = memref.load %arg2[%c3_31] : memref<4xf32, #tpu.memory_space<smem>>
    %c3_32 = arith.constant 3 : index
    %c0_33 = arith.constant 0 : index
    %59 = memref.load %arg1[%c3_32, %c0_33] : memref<4x4xf32, #tpu.memory_space<smem>>
    %60 = vector.broadcast %59 : f32 to vector<1x256xf32>
    %61 = arith.mulf %60, %0 : vector<1x256xf32>
    %62 = vector.broadcast %58 : f32 to vector<1x256xf32>
    %63 = arith.addf %62, %61 : vector<1x256xf32>
    %c3_34 = arith.constant 3 : index
    %c1_35 = arith.constant 1 : index
    %64 = memref.load %arg1[%c3_34, %c1_35] : memref<4x4xf32, #tpu.memory_space<smem>>
    %65 = vector.broadcast %64 : f32 to vector<1x256xf32>
    %66 = arith.mulf %65, %1 : vector<1x256xf32>
    %67 = arith.addf %63, %66 : vector<1x256xf32>
    %c3_36 = arith.constant 3 : index
    %c2_37 = arith.constant 2 : index
    %68 = memref.load %arg1[%c3_36, %c2_37] : memref<4x4xf32, #tpu.memory_space<smem>>
    %69 = vector.broadcast %68 : f32 to vector<1x256xf32>
    %70 = arith.mulf %69, %2 : vector<1x256xf32>
    %71 = arith.addf %67, %70 : vector<1x256xf32>
    %c3_38 = arith.constant 3 : index
    %c3_39 = arith.constant 3 : index
    %72 = memref.load %arg1[%c3_38, %c3_39] : memref<4x4xf32, #tpu.memory_space<smem>>
    %73 = vector.broadcast %72 : f32 to vector<1x256xf32>
    %74 = arith.mulf %73, %3 : vector<1x256xf32>
    %75 = arith.addf %71, %74 : vector<1x256xf32>
    %c4 = arith.constant 4 : index
    %c0_40 = arith.constant 0 : index
    %76 = vector.load %arg0[%c4, %c0_40] : memref<8x256xf32, #tpu.memory_space<vmem>>, vector<1x256xf32>
    %c5 = arith.constant 5 : index
    %c0_41 = arith.constant 0 : index
    %77 = vector.load %arg0[%c5, %c0_41] : memref<8x256xf32, #tpu.memory_space<vmem>>, vector<1x256xf32>
    %c6 = arith.constant 6 : index
    %c0_42 = arith.constant 0 : index
    %78 = vector.load %arg0[%c6, %c0_42] : memref<8x256xf32, #tpu.memory_space<vmem>>, vector<1x256xf32>
    %c7 = arith.constant 7 : index
    %c0_43 = arith.constant 0 : index
    %79 = vector.load %arg0[%c7, %c0_43] : memref<8x256xf32, #tpu.memory_space<vmem>>, vector<1x256xf32>
    %c0_44 = arith.constant 0 : index
    %80 = memref.load %arg2[%c0_44] : memref<4xf32, #tpu.memory_space<smem>>
    %c0_45 = arith.constant 0 : index
    %c0_46 = arith.constant 0 : index
    %81 = memref.load %arg1[%c0_45, %c0_46] : memref<4x4xf32, #tpu.memory_space<smem>>
    %82 = vector.broadcast %81 : f32 to vector<1x256xf32>
    %83 = arith.mulf %82, %76 : vector<1x256xf32>
    %84 = vector.broadcast %80 : f32 to vector<1x256xf32>
    %85 = arith.addf %84, %83 : vector<1x256xf32>
    %c0_47 = arith.constant 0 : index
    %c1_48 = arith.constant 1 : index
    %86 = memref.load %arg1[%c0_47, %c1_48] : memref<4x4xf32, #tpu.memory_space<smem>>
    %87 = vector.broadcast %86 : f32 to vector<1x256xf32>
    %88 = arith.mulf %87, %77 : vector<1x256xf32>
    %89 = arith.addf %85, %88 : vector<1x256xf32>
    %c0_49 = arith.constant 0 : index
    %c2_50 = arith.constant 2 : index
    %90 = memref.load %arg1[%c0_49, %c2_50] : memref<4x4xf32, #tpu.memory_space<smem>>
    %91 = vector.broadcast %90 : f32 to vector<1x256xf32>
    %92 = arith.mulf %91, %78 : vector<1x256xf32>
    %93 = arith.addf %89, %92 : vector<1x256xf32>
    %c0_51 = arith.constant 0 : index
    %c3_52 = arith.constant 3 : index
    %94 = memref.load %arg1[%c0_51, %c3_52] : memref<4x4xf32, #tpu.memory_space<smem>>
    %95 = vector.broadcast %94 : f32 to vector<1x256xf32>
    %96 = arith.mulf %95, %79 : vector<1x256xf32>
    %97 = arith.addf %93, %96 : vector<1x256xf32>
    %c1_53 = arith.constant 1 : index
    %98 = memref.load %arg2[%c1_53] : memref<4xf32, #tpu.memory_space<smem>>
    %c1_54 = arith.constant 1 : index
    %c0_55 = arith.constant 0 : index
    %99 = memref.load %arg1[%c1_54, %c0_55] : memref<4x4xf32, #tpu.memory_space<smem>>
    %100 = vector.broadcast %99 : f32 to vector<1x256xf32>
    %101 = arith.mulf %100, %76 : vector<1x256xf32>
    %102 = vector.broadcast %98 : f32 to vector<1x256xf32>
    %103 = arith.addf %102, %101 : vector<1x256xf32>
    %c1_56 = arith.constant 1 : index
    %c1_57 = arith.constant 1 : index
    %104 = memref.load %arg1[%c1_56, %c1_57] : memref<4x4xf32, #tpu.memory_space<smem>>
    %105 = vector.broadcast %104 : f32 to vector<1x256xf32>
    %106 = arith.mulf %105, %77 : vector<1x256xf32>
    %107 = arith.addf %103, %106 : vector<1x256xf32>
    %c1_58 = arith.constant 1 : index
    %c2_59 = arith.constant 2 : index
    %108 = memref.load %arg1[%c1_58, %c2_59] : memref<4x4xf32, #tpu.memory_space<smem>>
    %109 = vector.broadcast %108 : f32 to vector<1x256xf32>
    %110 = arith.mulf %109, %78 : vector<1x256xf32>
    %111 = arith.addf %107, %110 : vector<1x256xf32>
    %c1_60 = arith.constant 1 : index
    %c3_61 = arith.constant 3 : index
    %112 = memref.load %arg1[%c1_60, %c3_61] : memref<4x4xf32, #tpu.memory_space<smem>>
    %113 = vector.broadcast %112 : f32 to vector<1x256xf32>
    %114 = arith.mulf %113, %79 : vector<1x256xf32>
    %115 = arith.addf %111, %114 : vector<1x256xf32>
    %c2_62 = arith.constant 2 : index
    %116 = memref.load %arg2[%c2_62] : memref<4xf32, #tpu.memory_space<smem>>
    %c2_63 = arith.constant 2 : index
    %c0_64 = arith.constant 0 : index
    %117 = memref.load %arg1[%c2_63, %c0_64] : memref<4x4xf32, #tpu.memory_space<smem>>
    %118 = vector.broadcast %117 : f32 to vector<1x256xf32>
    %119 = arith.mulf %118, %76 : vector<1x256xf32>
    %120 = vector.broadcast %116 : f32 to vector<1x256xf32>
    %121 = arith.addf %120, %119 : vector<1x256xf32>
    %c2_65 = arith.constant 2 : index
    %c1_66 = arith.constant 1 : index
    %122 = memref.load %arg1[%c2_65, %c1_66] : memref<4x4xf32, #tpu.memory_space<smem>>
    %123 = vector.broadcast %122 : f32 to vector<1x256xf32>
    %124 = arith.mulf %123, %77 : vector<1x256xf32>
    %125 = arith.addf %121, %124 : vector<1x256xf32>
    %c2_67 = arith.constant 2 : index
    %c2_68 = arith.constant 2 : index
    %126 = memref.load %arg1[%c2_67, %c2_68] : memref<4x4xf32, #tpu.memory_space<smem>>
    %127 = vector.broadcast %126 : f32 to vector<1x256xf32>
    %128 = arith.mulf %127, %78 : vector<1x256xf32>
    %129 = arith.addf %125, %128 : vector<1x256xf32>
    %c2_69 = arith.constant 2 : index
    %c3_70 = arith.constant 3 : index
    %130 = memref.load %arg1[%c2_69, %c3_70] : memref<4x4xf32, #tpu.memory_space<smem>>
    %131 = vector.broadcast %130 : f32 to vector<1x256xf32>
    %132 = arith.mulf %131, %79 : vector<1x256xf32>
    %133 = arith.addf %129, %132 : vector<1x256xf32>
    %c3_71 = arith.constant 3 : index
    %134 = memref.load %arg2[%c3_71] : memref<4xf32, #tpu.memory_space<smem>>
    %c3_72 = arith.constant 3 : index
    %c0_73 = arith.constant 0 : index
    %135 = memref.load %arg1[%c3_72, %c0_73] : memref<4x4xf32, #tpu.memory_space<smem>>
    %136 = vector.broadcast %135 : f32 to vector<1x256xf32>
    %137 = arith.mulf %136, %76 : vector<1x256xf32>
    %138 = vector.broadcast %134 : f32 to vector<1x256xf32>
    %139 = arith.addf %138, %137 : vector<1x256xf32>
    %c3_74 = arith.constant 3 : index
    %c1_75 = arith.constant 1 : index
    %140 = memref.load %arg1[%c3_74, %c1_75] : memref<4x4xf32, #tpu.memory_space<smem>>
    %141 = vector.broadcast %140 : f32 to vector<1x256xf32>
    %142 = arith.mulf %141, %77 : vector<1x256xf32>
    %143 = arith.addf %139, %142 : vector<1x256xf32>
    %c3_76 = arith.constant 3 : index
    %c2_77 = arith.constant 2 : index
    %144 = memref.load %arg1[%c3_76, %c2_77] : memref<4x4xf32, #tpu.memory_space<smem>>
    %145 = vector.broadcast %144 : f32 to vector<1x256xf32>
    %146 = arith.mulf %145, %78 : vector<1x256xf32>
    %147 = arith.addf %143, %146 : vector<1x256xf32>
    %c3_78 = arith.constant 3 : index
    %c3_79 = arith.constant 3 : index
    %148 = memref.load %arg1[%c3_78, %c3_79] : memref<4x4xf32, #tpu.memory_space<smem>>
    %149 = vector.broadcast %148 : f32 to vector<1x256xf32>
    %150 = arith.mulf %149, %79 : vector<1x256xf32>
    %151 = arith.addf %147, %150 : vector<1x256xf32>
    %152 = tpu.concatenate %21, %39, %57, %75, %97, %115, %133, %151 in 0 : vector<1x256xf32>, vector<1x256xf32>, vector<1x256xf32>, vector<1x256xf32>, vector<1x256xf32>, vector<1x256xf32>, vector<1x256xf32>, vector<1x256xf32> -> vector<8x256xf32>
    %c0_80 = arith.constant 0 : index
    %c0_81 = arith.constant 0 : index
    %153 = vector.load %arg3[%c0_80, %c0_81] : memref<8x256xf32, #tpu.memory_space<vmem>>, vector<8x256xf32>
    tpu.vector_store %arg3[%c0_80, %c0_81], %152 {strides = array<i32>} : memref<8x256xf32, #tpu.memory_space<vmem>>, vector<8x256xf32>,
    return
  }
}

</mosaic_0001>

<llo_original>
// kernel: tpu_custom_call.1
$region0: #{tpu_custom_call.1}
  #allocation0 [shape = 'u32[]', space=smem, size = 0x4, offset = 0x4, fixed_abs, tag = 'smem constant byte address 0x4 - core index']
  #allocation1 [shape = 'u32[144,128]{1,0:T(1,128)}', space=vmem, size = 0x12000, scoped, tag = 'internal scratch']
  %s0 = inlined_call_operand.hbm [shape: f32[8,256], index: 0, kind: input, shape index: {}]
  %s1 = inlined_call_operand.hbm [shape: f32[4,4], index: 1, kind: input, shape index: {}]
  %s2 = inlined_call_operand.vmem [shape: f32[4], index: 2, kind: input, shape index: {}]
  %s3 = inlined_call_operand.hbm [shape: f32[8,256], index: 3, kind: output, shape index: {}]
  %s4 = sld [smem:[#allocation0]]
  $region34: #{tpu_custom_call.1} parent=0
    _
  %s6 = ssub.s32 1, %s4
  %s7 = scalar_select 0, %s6, %s4
  $region1: #{tpu_custom_call.1} parent=0
    #allocation2 [shape = 'u8[8192]{0}', space=vmem, size = 0x2000, scoped, tag = 'input window, operand 0, single buffered']
    #allocation3 [shape = 's32[1]{0}', space=sflag, size = 0x4, scoped, tag = 'scoped memory for tpu_custom_call.1']
    #allocation4 [shape = 's32[1]{0}', space=sflag, size = 0x4, scoped, tag = 'scoped memory for tpu_custom_call.1']
    #allocation5 [shape = 's32[1]{0}', space=sflag, size = 0x4, scoped, tag = 'scoped memory for tpu_custom_call.1']
    #allocation6 [shape = 's32[1]{0}', space=sflag, size = 0x4, scoped, tag = 'scoped memory for tpu_custom_call.1']
    #allocation7 [shape = 'u8[2048]{0}', space=smem, size = 0x800, scoped, tag = 'input window, operand 1, single buffered']
    #allocation8 [shape = 'u8[512]{0}', space=smem, size = 0x200, scoped, tag = 'input window, operand 2, single buffered']
    #allocation9 [shape = 'u8[8192]{0}', space=vmem, size = 0x2000, scoped, tag = 'output window, operand 0, single buffered']
    %8 = vsyncpa [#allocation3], 0
    %9 = vsyncpa [#allocation5], 0
    %10 = vsyncpa [#allocation6], 0
    %11 = vsyncpa [#allocation4], 0
    // Predicated region
    $region2: #{tpu_custom_call.1} parent=1 // pred_check
      _
    $region3: #{tpu_custom_call.1} parent=1 // pred_check_branch
      %13 = sbr.rel (0) target = $region5
    $region4: #{tpu_custom_call.1} parent=1 // pred_region
      %s15 = ssub.s32 256, 256
      %16 = vsyncadd [#allocation3], %s15
      %s18 = sshll.u32 [#allocation2], 4
      %s19 = int_to_ptr.vmem [resolvable:$true] %s18
      %21 = dma.hbm_to_vmem [thread:$0]  %s0, 256, %s19, [#allocation3]
    $region5: #{tpu_custom_call.1} parent=1 // pred_fallthru
      _
    // Predicated region
    $region6: #{tpu_custom_call.1} parent=1 // pred_check
      _
    $region7: #{tpu_custom_call.1} parent=1 // pred_check_branch
      %23 = sbr.rel (0) target = $region9
    $region8: #{tpu_custom_call.1} parent=1 // pred_region
      %s25 = ssub.s32 64, 64
      %26 = vsyncadd [#allocation5], %s25
      %29 = dma.hbm_to_smem %s1, 64, [#allocation7], [#allocation5]
    $region9: #{tpu_custom_call.1} parent=1 // pred_fallthru
      _
    // Predicated region
    $region10: #{tpu_custom_call.1} parent=1 // pred_check
      _
    $region11: #{tpu_custom_call.1} parent=1 // pred_check_branch
      %31 = sbr.rel (0) target = $region13
    $region12: #{tpu_custom_call.1} parent=1 // pred_region
      %s33 = ssub.s32 16, 16
      %34 = vsyncadd [#allocation6], %s33
      %s36 = sshll.u32 %s2, 4
      %s37 = int_to_ptr.vmem [resolvable:$true] %s36
      %39 = dma.vmem_to_smem %s37, 16, [#allocation8], [#allocation6]
    $region13: #{tpu_custom_call.1} parent=1 // pred_fallthru
      _
    // Predicated region
    $region14: #{tpu_custom_call.1} parent=1 // pred_check
      _
    $region15: #{tpu_custom_call.1} parent=1 // pred_check_branch
      %41 = sbr.rel (0) target = $region17
    $region16: #{tpu_custom_call.1} parent=1 // pred_region
      %42 = dma.done [#allocation3], 256
    $region17: #{tpu_custom_call.1} parent=1 // pred_fallthru
      _
    // Predicated region
    $region18: #{tpu_custom_call.1} parent=1 // pred_check
      _
    $region19: #{tpu_custom_call.1} parent=1 // pred_check_branch
      %44 = sbr.rel (0) target = $region21
    $region20: #{tpu_custom_call.1} parent=1 // pred_region
      %45 = dma.done [#allocation5], 64
    $region21: #{tpu_custom_call.1} parent=1 // pred_fallthru
      _
    // Predicated region
    $region22: #{tpu_custom_call.1} parent=1 // pred_check
      _
    $region23: #{tpu_custom_call.1} parent=1 // pred_check_branch
      %47 = sbr.rel (0) target = $region25
    $region24: #{tpu_custom_call.1} parent=1 // pred_region
      %48 = dma.done [#allocation6], 16
    $region25: #{tpu_custom_call.1} parent=1 // pred_fallthru
      _
    %49 = sfence
    %v50 = vld [vmem:[#allocation2] ss:$8 sm:$0x3]
    %s51 = scalar_lea.vmem [#allocation2], 1
    %v52 = vld [vmem:[%s51] ss:$8 sm:$0x3]
    %s53 = scalar_lea.vmem [#allocation2], 2
    %v54 = vld [vmem:[%s53] ss:$8 sm:$0x3]
    %s55 = scalar_lea.vmem [#allocation2], 3
    %v56 = vld [vmem:[%s55] ss:$8 sm:$0x3]
    %s57 = sld [smem:[#allocation8]]
    %s58 = sld [smem:[#allocation7]]
    %v59 = vstv %s58
    %v60 = vmul.f32 %v59, %v50
    %v61 = vstv %s57
    %v62 = vadd.f32 %v61, %v60
    %s63 = sld [smem:[#allocation7 + $0x1]]
    %v64 = vstv %s63
    %v65 = vmul.f32 %v64, %v52
    %v66 = vadd.f32 %v62, %v65
    %s67 = sld [smem:[#allocation7 + $0x2]]
    %v68 = vstv %s67
    %v69 = vmul.f32 %v68, %v54
    %v70 = vadd.f32 %v66, %v69
    %s71 = sld [smem:[#allocation7 + $0x3]]
    %v72 = vstv %s71
    %v73 = vmul.f32 %v72, %v56
    %v74 = vadd.f32 %v70, %v73
    %s75 = sld [smem:[#allocation8 + $0x1]]
    %s76 = sld [smem:[#allocation7 + $0x80]]
    %v77 = vstv %s76
    %v78 = vmul.f32 %v77, %v50
    %v79 = vstv %s75
    %v80 = vadd.f32 %v79, %v78
    %s81 = sld [smem:[#allocation7 + $0x81]]
    %v82 = vstv %s81
    %v83 = vmul.f32 %v82, %v52
    %v84 = vadd.f32 %v80, %v83
    %s85 = sld [smem:[#allocation7 + $0x82]]
    %v86 = vstv %s85
    %v87 = vmul.f32 %v86, %v54
    %v88 = vadd.f32 %v84, %v87
    %s89 = sld [smem:[#allocation7 + $0x83]]
    %v90 = vstv %s89
    %v91 = vmul.f32 %v90, %v56
    %v92 = vadd.f32 %v88, %v91
    %s93 = sld [smem:[#allocation8 + $0x2]]
    %s94 = sld [smem:[#allocation7 + $0x100]]
    %v95 = vstv %s94
    %v96 = vmul.f32 %v95, %v50
    %v97 = vstv %s93
    %v98 = vadd.f32 %v97, %v96
    %s99 = sld [smem:[#allocation7 + $0x101]]
    %v100 = vstv %s99
    %v101 = vmul.f32 %v100, %v52
    %v102 = vadd.f32 %v98, %v101
    %s103 = sld [smem:[#allocation7 + $0x102]]
    %v104 = vstv %s103
    %v105 = vmul.f32 %v104, %v54
    %v106 = vadd.f32 %v102, %v105
    %s107 = sld [smem:[#allocation7 + $0x103]]
    %v108 = vstv %s107
    %v109 = vmul.f32 %v108, %v56
    %v110 = vadd.f32 %v106, %v109
    %s111 = sld [smem:[#allocation8 + $0x3]]
    %s112 = sld [smem:[#allocation7 + $0x180]]
    %v113 = vstv %s112
    %v114 = vmul.f32 %v113, %v50
    %v115 = vstv %s111
    %v116 = vadd.f32 %v115, %v114
    %s117 = sld [smem:[#allocation7 + $0x181]]
    %v118 = vstv %s117
    %v119 = vmul.f32 %v118, %v52
    %v120 = vadd.f32 %v116, %v119
    %s121 = sld [smem:[#allocation7 + $0x182]]
    %v122 = vstv %s121
    %v123 = vmul.f32 %v122, %v54
    %v124 = vadd.f32 %v120, %v123
    %s125 = sld [smem:[#allocation7 + $0x183]]
    %v126 = vstv %s125
    %v127 = vmul.f32 %v126, %v56
    %v128 = vadd.f32 %v124, %v127
    %s129 = scalar_lea.vmem [#allocation2], 4
    %v130 = vld [vmem:[%s129] ss:$8 sm:$0x3]
    %s131 = scalar_lea.vmem [#allocation2], 5
    %v132 = vld [vmem:[%s131] ss:$8 sm:$0x3]
    %s133 = scalar_lea.vmem [#allocation2], 6
    %v134 = vld [vmem:[%s133] ss:$8 sm:$0x3]
    %s135 = scalar_lea.vmem [#allocation2], 7
    %v136 = vld [vmem:[%s135] ss:$8 sm:$0x3]
    %v137 = vmul.f32 %v59, %v130
    %v138 = vadd.f32 %v61, %v137
    %v139 = vmul.f32 %v64, %v132
    %v140 = vadd.f32 %v138, %v139
    %v141 = vmul.f32 %v68, %v134
    %v142 = vadd.f32 %v140, %v141
    %v143 = vmul.f32 %v72, %v136
    %v144 = vadd.f32 %v142, %v143
    %v145 = vmul.f32 %v77, %v130
    %v146 = vadd.f32 %v79, %v145
    %v147 = vmul.f32 %v82, %v132
    %v148 = vadd.f32 %v146, %v147
    %v149 = vmul.f32 %v86, %v134
    %v150 = vadd.f32 %v148, %v149
    %v151 = vmul.f32 %v90, %v136
    %v152 = vadd.f32 %v150, %v151
    %v153 = vmul.f32 %v95, %v130
    %v154 = vadd.f32 %v97, %v153
    %v155 = vmul.f32 %v100, %v132
    %v156 = vadd.f32 %v154, %v155
    %v157 = vmul.f32 %v104, %v134
    %v158 = vadd.f32 %v156, %v157
    %v159 = vmul.f32 %v108, %v136
    %v160 = vadd.f32 %v158, %v159
    %v161 = vmul.f32 %v113, %v130
    %v162 = vadd.f32 %v115, %v161
    %v163 = vmul.f32 %v118, %v132
    %v164 = vadd.f32 %v162, %v163
    %v165 = vmul.f32 %v122, %v134
    %v166 = vadd.f32 %v164, %v165
    %v167 = vmul.f32 %v126, %v136
    %v168 = vadd.f32 %v166, %v167
    %v170 = vlaneseq
    %v171 = vshrl.u32 %v170, 7
    %v172 = vsub.s32 0, %v171
    %v173 = vrot.slane %v74, %v172
    %v174 = vlaneseq
    %v175 = vshrl.u32 %v174, 7
    %v176 = vsub.s32 1, %v175
    %v177 = vrot.slane %v74, %v176
    %v181 = vlaneseq
    %v182 = vshrl.u32 %v181, 7
    %v183 = vsub.s32 0, %v182
    %v184 = vrot.slane %v92, %v183
    %v185 = vlaneseq
    %v186 = vshrl.u32 %v185, 7
    %v187 = vsub.s32 1, %v186
    %v188 = vrot.slane %v92, %v187
    %v192 = vlaneseq
    %v193 = vshrl.u32 %v192, 7
    %v194 = vsub.s32 0, %v193
    %v195 = vrot.slane %v110, %v194
    %v196 = vlaneseq
    %v197 = vshrl.u32 %v196, 7
    %v198 = vsub.s32 1, %v197
    %v199 = vrot.slane %v110, %v198
    %v203 = vlaneseq
    %v204 = vshrl.u32 %v203, 7
    %v205 = vsub.s32 0, %v204
    %v206 = vrot.slane %v128, %v205
    %v207 = vlaneseq
    %v208 = vshrl.u32 %v207, 7
    %v209 = vsub.s32 1, %v208
    %v210 = vrot.slane %v128, %v209
    %v214 = vlaneseq
    %v215 = vshrl.u32 %v214, 7
    %v216 = vsub.s32 0, %v215
    %v217 = vrot.slane %v144, %v216
    %v218 = vlaneseq
    %v219 = vshrl.u32 %v218, 7
    %v220 = vsub.s32 1, %v219
    %v221 = vrot.slane %v144, %v220
    %v225 = vlaneseq
    %v226 = vshrl.u32 %v225, 7
    %v227 = vsub.s32 0, %v226
    %v228 = vrot.slane %v152, %v227
    %v229 = vlaneseq
    %v230 = vshrl.u32 %v229, 7
    %v231 = vsub.s32 1, %v230
    %v232 = vrot.slane %v152, %v231
    %v236 = vlaneseq
    %v237 = vshrl.u32 %v236, 7
    %v238 = vsub.s32 0, %v237
    %v239 = vrot.slane %v160, %v238
    %v240 = vlaneseq
    %v241 = vshrl.u32 %v240, 7
    %v242 = vsub.s32 1, %v241
    %v243 = vrot.slane %v160, %v242
    %v247 = vlaneseq
    %v248 = vshrl.u32 %v247, 7
    %v249 = vsub.s32 0, %v248
    %v250 = vrot.slane %v168, %v249
    %v251 = vlaneseq
    %v252 = vshrl.u32 %v251, 7
    %v253 = vsub.s32 1, %v252
    %v254 = vrot.slane %v168, %v253
    %vm257 = vcmask 1040384
    %v258 = vsel %vm257, %v173, %v184
    %v259 = vsel %vm257, %v177, %v188
    %vm260 = vcmask 1041408
    %v261 = vsel %vm260, %v258, %v195
    %v262 = vsel %vm260, %v259, %v199
    %vm263 = vcmask 1042432
    %v264 = vsel %vm263, %v261, %v206
    %v265 = vsel %vm263, %v262, %v210
    %vm266 = vcmask 1043456
    %v267 = vsel %vm266, %v264, %v217
    %v268 = vsel %vm266, %v265, %v221
    %vm269 = vcmask 1044480
    %v270 = vsel %vm269, %v267, %v228
    %v271 = vsel %vm269, %v268, %v232
    %vm272 = vcmask 1045504
    %v273 = vsel %vm272, %v270, %v239
    %v274 = vsel %vm272, %v271, %v243
    %vm275 = vcmask 1046528
    %v276 = vsel %vm275, %v273, %v250
    %v277 = vsel %vm275, %v274, %v254
    %278 = vst [vmem:[#allocation9] sm:$0xff] %v276
    %279 = vst [vmem:[#allocation9 + $0x8] sm:$0xff] %v277
    // Predicated region
    $region26: #{tpu_custom_call.1} parent=1 // pred_check
      _
    $region27: #{tpu_custom_call.1} parent=1 // pred_check_branch
      %281 = sbr.rel (0) target = $region29
    $region28: #{tpu_custom_call.1} parent=1 // pred_region
      %s283 = ssub.s32 256, 256
      %284 = vsyncadd [#allocation4], %s283
      %s286 = sshll.u32 [#allocation9], 4
      %s287 = int_to_ptr.vmem [resolvable:$true] %s286
      %289 = dma.vmem_to_hbm [thread:$0]  %s287, 256, %s3, [#allocation4]
    $region29: #{tpu_custom_call.1} parent=1 // pred_fallthru
      _
    // Predicated region
    $region30: #{tpu_custom_call.1} parent=1 // pred_check
      _
    $region31: #{tpu_custom_call.1} parent=1 // pred_check_branch
      %291 = sbr.rel (0) target = $region33
    $region32: #{tpu_custom_call.1} parent=1 // pred_region
      %292 = dma.done [#allocation4], 256
    $region33: #{tpu_custom_call.1} parent=1 // pred_fallthru
      _
    %293 = vsyncpa [#allocation3], 1
    %294 = vsyncpa [#allocation4], 1
    %295 = vsyncpa [#allocation5], 1
    %296 = vsyncpa [#allocation6], 1

</llo_original>
